<compile_context>
chip_gen: v7x
topology: tpu7x:2x2x1
jax: 0.10.0
libtpu: 0.0.40
codegen_flags: <defaults>
</compile_context>

<pallas_src>
import jax
import jax.numpy as jnp
from jax.experimental import pallas as pl
from jax.experimental.pallas import tpu as pltpu

_LANES = 128
_MAX_TILE_ROWS = 2048   # 2048 x 128 x 4B = 1 MiB f32 per input block


def _make_density_loss_kernel(density_clip, tile_rows, num_blocks, edge_rows):
    groups = tile_rows // 8
    has_edge = edge_rows != tile_rows   # static: partial last tile exists?

    def kernel(pred_ref, gt_ref, sum_ref, cnt_ref, acc_sum, acc_cnt):
        i = pl.program_id(0)

        @pl.when(i == 0)
        def _init():
            acc_sum[...] = jnp.zeros_like(acc_sum)
            acc_cnt[...] = jnp.zeros_like(acc_cnt)

        def accumulate(row_mask):
            gt = gt_ref[...].astype(jnp.float32)
            pred = pred_ref[...].astype(jnp.float32)
            select = jnp.abs(gt) <= density_clip
            if row_mask is not None:
                select = select & row_mask
            # jnp.where (not mask-multiply) so garbage in invalid rows of the
            # edge tile can never leak NaN/Inf into the accumulators.
            msum = jnp.where(select, jnp.abs(gt - pred), 0.0)
            mcnt = jnp.where(select, 1.0, 0.0)
            # Leading-axis fold: pure VPU adds, leaves an (8, 128) partial.
            acc_sum[...] += msum.reshape(groups, 8, _LANES).sum(axis=0)
            acc_cnt[...] += mcnt.reshape(groups, 8, _LANES).sum(axis=0)

        if not has_edge:
            # Hot path for every block: no index arithmetic at all.
            accumulate(None)
        else:
            @pl.when(i < num_blocks - 1)
            def _hot():
                accumulate(None)

            @pl.when(i == num_blocks - 1)
            def _edge():
                # Only the last (partial) tile pays for the row mask.
                row_ids = jax.lax.broadcasted_iota(
                    jnp.int32, (tile_rows, _LANES), 0)
                accumulate(row_ids < edge_rows)

        @pl.when(i == num_blocks - 1)
        def _finalize():
            # Single tiny sublane reduce; the 128-lane reduce + divide happen
            # in the JAX wrapper.
            sum_ref[...] = jnp.sum(acc_sum[...], axis=0, keepdims=True)
            cnt_ref[...] = jnp.sum(acc_cnt[...], axis=0, keepdims=True)

    return kernel


def _masked_l1_sums_jax(pred, gt, density_clip):
    """Pure-JAX masked (sum, count) — used for tails / tiny inputs."""
    gt = gt.astype(jnp.float32)
    pred = pred.astype(jnp.float32)
    select = jnp.abs(gt) <= density_clip
    s = jnp.sum(jnp.where(select, jnp.abs(gt - pred), 0.0))
    c = jnp.sum(select.astype(jnp.float32))
    return s, c


def density_loss(density_pred, density_gt, density_clip: float = 0.1):
    """Pallas TPU implementation of DensityLoss.forward."""
    density_pred = jnp.asarray(density_pred)
    density_gt = jnp.asarray(density_gt)

    pred_flat = jnp.ravel(density_pred)
    gt_flat = jnp.ravel(density_gt)
    n = pred_flat.shape[0]

    rows = n // _LANES
    tail = n - rows * _LANES

    # Sublane granule for the narrowest input dtype (8 f32 / 16 bf16 / 32 i8).
    itemsize = min(density_pred.dtype.itemsize, density_gt.dtype.itemsize)
    granule = 8 * max(1, 4 // max(1, itemsize))

    if rows < granule:
        # Tiny input: a kernel launch buys nothing; pure JAX matches semantics.
        s, c = _masked_l1_sums_jax(pred_flat, gt_flat, density_clip)
        return s / c

    bulk = rows * _LANES
    if tail:
        # Only the <=127-element remainder is handled outside the kernel; the
        # full-array jnp.pad copy of the previous revision is gone.
        pred_bulk, gt_bulk = pred_flat[:bulk], gt_flat[:bulk]
        tail_sum, tail_cnt = _masked_l1_sums_jax(
            pred_flat[bulk:], gt_flat[bulk:], density_clip)
    else:
        pred_bulk, gt_bulk = pred_flat, gt_flat
        tail_sum = tail_cnt = jnp.float32(0.0)

    pred2d = pred_bulk.reshape(rows, _LANES)
    gt2d = gt_bulk.reshape(rows, _LANES)

    # Big lane-dense tiles (near HBM roofline); small inputs collapse to a
    # single block.  tile_rows is a dtype-aware sublane multiple; any partial
    # edge tile is masked in-kernel on the edge path only.
    tile_rows = min(_MAX_TILE_ROWS, (rows // granule) * granule)
    num_blocks = -(-rows // tile_rows)
    edge_rows = rows - (num_blocks - 1) * tile_rows   # static Python int

    kernel = _make_density_loss_kernel(density_clip, tile_rows, num_blocks,
                                       edge_rows)

    sums, cnts = pl.pallas_call(
        kernel,
        out_shape=(
            jax.ShapeDtypeStruct((1, _LANES), jnp.float32),
            jax.ShapeDtypeStruct((1, _LANES), jnp.float32),
        ),
        grid_spec=pltpu.PrefetchScalarGridSpec(
            num_scalar_prefetch=0,
            grid=(num_blocks,),
            in_specs=[
                pl.BlockSpec((tile_rows, _LANES), lambda i: (i, 0)),
                pl.BlockSpec((tile_rows, _LANES), lambda i: (i, 0)),
            ],
            out_specs=(
                pl.BlockSpec((1, _LANES), lambda i: (0, 0)),
                pl.BlockSpec((1, _LANES), lambda i: (0, 0)),
            ),
            scratch_shapes=[
                pltpu.VMEM((8, _LANES), jnp.float32),  # masked |gt-pred| partials
                pltpu.VMEM((8, _LANES), jnp.float32),  # mask-count partials
            ],
        ),
        compiler_params=pltpu.CompilerParams(
            dimension_semantics=("arbitrary",),
        ),
    )(pred2d, gt2d)

    total_sum = jnp.sum(sums) + tail_sum
    total_cnt = jnp.sum(cnts) + tail_cnt
    return total_sum / total_cnt


def density_loss_ref(density_pred, density_gt, density_clip: float = 0.1):
    """Pure-JAX reference matching the PyTorch module."""
    gt = density_gt.astype(jnp.float32)
    pred = density_pred.astype(jnp.float32)
    loss = jnp.abs(gt - pred)
    mask = (jnp.abs(gt) <= density_clip).astype(jnp.float32)
    return jnp.sum(loss * mask) / jnp.sum(mask)


if __name__ == "__main__":
    key = jax.random.PRNGKey(0)
    k1, k2 = jax.random.split(key)

    # Small NCHW inputs consistent with a density map regression head.
    shape = (2, 4, 16, 16)
    density_pred = 0.1 * jax.random.normal(k1, shape, dtype=jnp.float32)
    density_gt = 0.1 * jax.random.normal(k2, shape, dtype=jnp.float32)

    out = density_loss(density_pred, density_gt, density_clip=0.1)
    out = jax.block_until_ready(out)

    ref = density_loss_ref(density_pred, density_gt, density_clip=0.1)
    assert jnp.allclose(out, ref, rtol=1e-5, atol=1e-6), (out, ref)

    print("KERNEL_OK")
</pallas_src>

<mosaic_0001>
module attributes {stable_mosaic.version = 11 : i64} {
  func.func @kernel(%arg0: i32, %arg1: memref<16x128xf32, #tpu.memory_space<vmem>>, %arg2: memref<16x128xf32, #tpu.memory_space<vmem>>, %arg3: memref<1x128xf32, #tpu.memory_space<vmem>>, %arg4: memref<1x128xf32, #tpu.memory_space<vmem>>, %arg5: memref<8x128xf32, #tpu.memory_space<vmem>>, %arg6: memref<8x128xf32, #tpu.memory_space<vmem>>) attributes {dimension_semantics = [#tpu.dimension_semantics<arbitrary>], iteration_bounds = array<i64: 1>, scalar_prefetch = 0 : i64, scratch_operands = 2 : i64, tpu.core_type = #tpu.core_type<tc>, window_params = [{transform_indices = @transform_0, window_bounds = array<i64: 16, 128>}, {transform_indices = @transform_1, window_bounds = array<i64: 16, 128>}, {pipeline_mode = #tpu.pipeline_mode<synchronous>, transform_indices = @transform_2, window_bounds = array<i64: 1, 128>}, {pipeline_mode = #tpu.pipeline_mode<synchronous>, transform_indices = @transform_3, window_bounds = array<i64: 1, 128>}]} {
    %c0_i32 = arith.constant 0 : i32
    %0 = arith.cmpi eq, %arg0, %c0_i32 : i32
    %1 = arith.extui %0 : i1 to i32
    %c0_i32_0 = arith.constant 0 : i32
    %2 = arith.cmpi ne, %1, %c0_i32_0 : i32
    scf.if %2 {
      %cst_19 = arith.constant 0.000000e+00 : f32
      %28 = vector.broadcast %cst_19 : f32 to vector<8x128xf32>
      %c0_20 = arith.constant 0 : index
      %c0_21 = arith.constant 0 : index
      %29 = vector.load %arg5[%c0_20, %c0_21] : memref<8x128xf32, #tpu.memory_space<vmem>>, vector<8x128xf32>
      tpu.vector_store %arg5[%c0_20, %c0_21], %28 {strides = array<i32>} : memref<8x128xf32, #tpu.memory_space<vmem>>, vector<8x128xf32>,
      %cst_22 = arith.constant 0.000000e+00 : f32
      %30 = vector.broadcast %cst_22 : f32 to vector<8x128xf32>
      %c0_23 = arith.constant 0 : index
      %c0_24 = arith.constant 0 : index
      %31 = vector.load %arg6[%c0_23, %c0_24] : memref<8x128xf32, #tpu.memory_space<vmem>>, vector<8x128xf32>
      tpu.vector_store %arg6[%c0_23, %c0_24], %30 {strides = array<i32>} : memref<8x128xf32, #tpu.memory_space<vmem>>, vector<8x128xf32>,
    } else {
    }
    %c0 = arith.constant 0 : index
    %c0_1 = arith.constant 0 : index
    %3 = vector.load %arg2[%c0, %c0_1] : memref<16x128xf32, #tpu.memory_space<vmem>>, vector<16x128xf32>
    %c0_2 = arith.constant 0 : index
    %c0_3 = arith.constant 0 : index
    %4 = vector.load %arg1[%c0_2, %c0_3] : memref<16x128xf32, #tpu.memory_space<vmem>>, vector<16x128xf32>
    %5 = math.absf %3 : vector<16x128xf32>
    %cst = arith.constant 1.000000e-01 : f32
    %6 = vector.broadcast %cst : f32 to vector<16x128xf32>
    %7 = arith.cmpf ole, %5, %6 : vector<16x128xf32>
    %8 = arith.subf %3, %4 : vector<16x128xf32>
    %9 = math.absf %8 : vector<16x128xf32>
    %cst_4 = arith.constant 0.000000e+00 : f32
    %10 = vector.broadcast %cst_4 : f32 to vector<16x128xf32>
    %11 = arith.select %7, %9, %10 : vector<16x128xi1>, vector<16x128xf32>
    %cst_5 = arith.constant 1.000000e+00 : f32
    %cst_6 = arith.constant 0.000000e+00 : f32
    %12 = vector.broadcast %cst_5 : f32 to vector<16x128xf32>
    %13 = vector.broadcast %cst_6 : f32 to vector<16x128xf32>
    %14 = arith.select %7, %12, %13 : vector<16x128xi1>, vector<16x128xf32>
    %c0_7 = arith.constant 0 : index
    %c0_8 = arith.constant 0 : index
    %15 = vector.load %arg5[%c0_7, %c0_8] : memref<8x128xf32, #tpu.memory_space<vmem>>, vector<8x128xf32>
    %16 = vector.shape_cast %11 : vector<16x128xf32> to vector<2x8x128xf32>
    %cst_9 = arith.constant dense<0.000000e+00> : vector<8x128xf32>
    %17 = vector.multi_reduction <add>, %16, %cst_9 [0] : vector<2x8x128xf32> to vector<8x128xf32>
    %18 = arith.addf %15, %17 : vector<8x128xf32>
    %c0_10 = arith.constant 0 : index
    %c0_11 = arith.constant 0 : index
    %19 = vector.load %arg5[%c0_10, %c0_11] : memref<8x128xf32, #tpu.memory_space<vmem>>, vector<8x128xf32>
    tpu.vector_store %arg5[%c0_10, %c0_11], %18 {strides = array<i32>} : memref<8x128xf32, #tpu.memory_space<vmem>>, vector<8x128xf32>,
    %c0_12 = arith.constant 0 : index
    %c0_13 = arith.constant 0 : index
    %20 = vector.load %arg6[%c0_12, %c0_13] : memref<8x128xf32, #tpu.memory_space<vmem>>, vector<8x128xf32>
    %21 = vector.shape_cast %14 : vector<16x128xf32> to vector<2x8x128xf32>
    %cst_14 = arith.constant dense<0.000000e+00> : vector<8x128xf32>
    %22 = vector.multi_reduction <add>, %21, %cst_14 [0] : vector<2x8x128xf32> to vector<8x128xf32>
    %23 = arith.addf %20, %22 : vector<8x128xf32>
    %c0_15 = arith.constant 0 : index
    %c0_16 = arith.constant 0 : index
    %24 = vector.load %arg6[%c0_15, %c0_16] : memref<8x128xf32, #tpu.memory_space<vmem>>, vector<8x128xf32>
    tpu.vector_store %arg6[%c0_15, %c0_16], %23 {strides = array<i32>} : memref<8x128xf32, #tpu.memory_space<vmem>>, vector<8x128xf32>,
    %c0_i32_17 = arith.constant 0 : i32
    %25 = arith.cmpi eq, %arg0, %c0_i32_17 : i32
    %26 = arith.extui %25 : i1 to i32
    %c0_i32_18 = arith.constant 0 : i32
    %27 = arith.cmpi ne, %26, %c0_i32_18 : i32
    scf.if %27 {
      %c0_19 = arith.constant 0 : index
      %c0_20 = arith.constant 0 : index
      %28 = vector.load %arg5[%c0_19, %c0_20] : memref<8x128xf32, #tpu.memory_space<vmem>>, vector<8x128xf32>
      %cst_21 = arith.constant dense<0.000000e+00> : vector<128xf32>
      %29 = vector.multi_reduction <add>, %28, %cst_21 [0] : vector<8x128xf32> to vector<128xf32>
      %30 = vector.shape_cast %29 : vector<128xf32> to vector<1x128xf32>
      %c0_22 = arith.constant 0 : index
      %c0_23 = arith.constant 0 : index
      %31 = vector.load %arg3[%c0_22, %c0_23] : memref<1x128xf32, #tpu.memory_space<vmem>>, vector<1x128xf32>
      tpu.vector_store %arg3[%c0_22, %c0_23], %30 {strides = array<i32>} : memref<1x128xf32, #tpu.memory_space<vmem>>, vector<1x128xf32>,
      %c0_24 = arith.constant 0 : index
      %c0_25 = arith.constant 0 : index
      %32 = vector.load %arg6[%c0_24, %c0_25] : memref<8x128xf32, #tpu.memory_space<vmem>>, vector<8x128xf32>
      %cst_26 = arith.constant dense<0.000000e+00> : vector<128xf32>
      %33 = vector.multi_reduction <add>, %32, %cst_26 [0] : vector<8x128xf32> to vector<128xf32>
      %34 = vector.shape_cast %33 : vector<128xf32> to vector<1x128xf32>
      %c0_27 = arith.constant 0 : index
      %c0_28 = arith.constant 0 : index
      %35 = vector.load %arg4[%c0_27, %c0_28] : memref<1x128xf32, #tpu.memory_space<vmem>>, vector<1x128xf32>
      tpu.vector_store %arg4[%c0_27, %c0_28], %34 {strides = array<i32>} : memref<1x128xf32, #tpu.memory_space<vmem>>, vector<1x128xf32>,
    } else {
    }
    return
  }
  func.func @transform_0(%arg0: i32) -> (i32, i32) {
    %c0_i32 = arith.constant 0 : i32
    %c0_i32_0 = arith.constant 0 : i32
    return %arg0, %c0_i32 : i32, i32
  }
  func.func @transform_1(%arg0: i32) -> (i32, i32) {
    %c0_i32 = arith.constant 0 : i32
    %c0_i32_0 = arith.constant 0 : i32
    return %arg0, %c0_i32 : i32, i32
  }
  func.func @transform_2(%arg0: i32) -> (i32, i32) {
    %c0_i32 = arith.constant 0 : i32
    %c0_i32_0 = arith.constant 0 : i32
    %c0_i32_1 = arith.constant 0 : i32
    return %c0_i32, %c0_i32_0 : i32, i32
  }
  func.func @transform_3(%arg0: i32) -> (i32, i32) {
    %c0_i32 = arith.constant 0 : i32
    %c0_i32_0 = arith.constant 0 : i32
    %c0_i32_1 = arith.constant 0 : i32
    return %c0_i32, %c0_i32_0 : i32, i32
  }
}

</mosaic_0001>

<llo_original>
// kernel: tpu_custom_call.1
$region0: #{tpu_custom_call.1}
  #allocation0 [shape = 'u32[]', space=smem, size = 0x4, offset = 0x4, fixed_abs, tag = 'smem constant byte address 0x4 - core index']
  #allocation1 [shape = 'u32[144,128]{1,0:T(1,128)}', space=vmem, size = 0x12000, scoped, tag = 'internal scratch']
  #allocation2 [shape = 'f32[8,128]{1,0:T(8,128)}', space=vmem, size = 0x1000, scoped, tag = 'scratch operand']
  #allocation3 [shape = 'f32[8,128]{1,0:T(8,128)}', space=vmem, size = 0x1000, scoped, tag = 'scratch operand']
  %s0 = inlined_call_operand.hbm [shape: f32[16,128], index: 0, kind: input, shape index: {}]
  %s1 = inlined_call_operand.hbm [shape: f32[16,128], index: 1, kind: input, shape index: {}]
  %s2 = inlined_call_operand.hbm [shape: f32[1,128], index: 2, kind: output, shape index: {0}]
  %s3 = inlined_call_operand.hbm [shape: f32[1,128], index: 3, kind: output, shape index: {1}]
  %4 = xla_tuple %s2, %s3
  %s5 = sld [smem:[#allocation0]]
  $region42: #{tpu_custom_call.1} parent=0
    _
  %s7 = ssub.s32 1, %s5
  %s8 = scalar_select 0, %s7, %s5
  $region1: #{tpu_custom_call.1} parent=0
    #allocation4 [shape = 'u8[8192]{0}', space=vmem, size = 0x2000, scoped, tag = 'input window, operand 0, single buffered']
    #allocation5 [shape = 's32[1]{0}', space=sflag, size = 0x4, scoped, tag = 'scoped memory for tpu_custom_call.1']
    #allocation6 [shape = 's32[1]{0}', space=sflag, size = 0x4, scoped, tag = 'scoped memory for tpu_custom_call.1']
    #allocation7 [shape = 'u8[8192]{0}', space=vmem, size = 0x2000, scoped, tag = 'input window, operand 1, single buffered']
    #allocation8 [shape = 's32[1]{0}', space=sflag, size = 0x4, scoped, tag = 'scoped memory for tpu_custom_call.1']
    #allocation9 [shape = 'u8[512]{0}', space=vmem, size = 0x400, scoped, tag = 'output window, operand 0, single buffered']
    #allocation10 [shape = 'u8[512]{0}', space=vmem, size = 0x400, scoped, tag = 'output window, operand 1, single buffered']
    #allocation11 [shape = 's32[1]{0}', space=sflag, size = 0x4, scoped, tag = 'scoped memory for tpu_custom_call.1']
    %9 = vsyncpa [#allocation5], 0
    %10 = vsyncpa [#allocation8], 0
    %11 = vsyncpa [#allocation6], 0
    %12 = vsyncpa [#allocation11], 0
    // Predicated region
    $region2: #{tpu_custom_call.1} parent=1 // pred_check
      _
    $region3: #{tpu_custom_call.1} parent=1 // pred_check_branch
      %14 = sbr.rel (0) target = $region5
    $region4: #{tpu_custom_call.1} parent=1 // pred_region
      %s16 = ssub.s32 256, 256
      %17 = vsyncadd [#allocation5], %s16
      %s18 = sshll.u32 [#allocation4], 4
      %s19 = int_to_ptr.vmem [resolvable:$true] %s18
      %24 = dma.hbm_to_vmem [thread:$0]  %s0, 256, %s19, [#allocation5], 128, 128, 8
    $region5: #{tpu_custom_call.1} parent=1 // pred_fallthru
      _
    // Predicated region
    $region6: #{tpu_custom_call.1} parent=1 // pred_check
      _
    $region7: #{tpu_custom_call.1} parent=1 // pred_check_branch
      %26 = sbr.rel (0) target = $region9
    $region8: #{tpu_custom_call.1} parent=1 // pred_region
      %s28 = ssub.s32 256, 256
      %29 = vsyncadd [#allocation8], %s28
      %s30 = sshll.u32 [#allocation7], 4
      %s31 = int_to_ptr.vmem [resolvable:$true] %s30
      %36 = dma.hbm_to_vmem [thread:$0]  %s1, 256, %s31, [#allocation8], 128, 128, 8
    $region9: #{tpu_custom_call.1} parent=1 // pred_fallthru
      _
    // Predicated region
    $region10: #{tpu_custom_call.1} parent=1 // pred_check
      _
    $region11: #{tpu_custom_call.1} parent=1 // pred_check_branch
      %38 = sbr.rel (0) target = $region13
    $region12: #{tpu_custom_call.1} parent=1 // pred_region
      %39 = dma.done [#allocation5], 256
    $region13: #{tpu_custom_call.1} parent=1 // pred_fallthru
      _
    // Predicated region
    $region14: #{tpu_custom_call.1} parent=1 // pred_check
      _
    $region15: #{tpu_custom_call.1} parent=1 // pred_check_branch
      %41 = sbr.rel (0) target = $region17
    $region16: #{tpu_custom_call.1} parent=1 // pred_region
      %42 = dma.done [#allocation8], 256
    $region17: #{tpu_custom_call.1} parent=1 // pred_fallthru
      _
    %p43 = scmp.eq.s32.totalorder 0, 0
    // Predicated region
    $region18: #{tpu_custom_call.1} parent=1 // pred_check
      %p44 = pneg %p43
    $region19: #{tpu_custom_call.1} parent=1 // pred_check_branch
      %46 = sbr.rel (%p44) target = $region21
    $region20: #{tpu_custom_call.1} parent=1 // pred_region
      %47 = vst [vmem:[#allocation2] sm:$0xff] 0.0
      %48 = vst [vmem:[#allocation3] sm:$0xff] 0.0
    $region21: #{tpu_custom_call.1} parent=1 // pred_fallthru
      _
    %v49 = vld [vmem:[#allocation7] sm:$0xff]
    %v50 = vld [vmem:[#allocation7 + $0x8] sm:$0xff]
    %v51 = vld [vmem:[#allocation4] sm:$0xff]
    %v52 = vld [vmem:[#allocation4 + $0x8] sm:$0xff]
    %v53 = vand.u32 2147483647, %v49
    %v54 = vand.u32 2147483647, %v50
    %vm55 = vcmp.le.f32.partialorder %v53, 0.1
    %vm56 = vcmp.le.f32.partialorder %v54, 0.1
    %v57 = vsub.f32 %v49, %v51
    %v58 = vsub.f32 %v50, %v52
    %v59 = vand.u32 2147483647, %v57
    %v60 = vand.u32 2147483647, %v58
    %v61 = vsel %vm55, %v59, 0.0
    %v62 = vsel %vm56, %v60, 0.0
    %v63 = vsel %vm55, 1.0, 0.0
    %v64 = vsel %vm56, 1.0, 0.0
    %v65 = vld [vmem:[#allocation2] sm:$0xff]
    %v66 = vadd.f32 %v61, %v62
    %v67 = vadd.f32 %v65, %v66
    %68 = vst [vmem:[#allocation2] sm:$0xff] %v67
    %v69 = vld [vmem:[#allocation3] sm:$0xff]
    %v70 = vadd.f32 %v63, %v64
    %v71 = vadd.f32 %v69, %v70
    %72 = vst [vmem:[#allocation3] sm:$0xff] %v71
    // Predicated region
    $region22: #{tpu_custom_call.1} parent=1 // pred_check
      %p73 = pneg %p43
    $region23: #{tpu_custom_call.1} parent=1 // pred_check_branch
      %75 = sbr.rel (%p73) target = $region25
    $region24: #{tpu_custom_call.1} parent=1 // pred_region
      %v76 = vld [vmem:[#allocation2] sm:$0xff]
      %v77 = vrot.slane %v76, 4
      %v78 = vadd.f32 %v76, %v77
      %v79 = vrot.slane %v78, 2
      %v80 = vadd.f32 %v78, %v79
      %v81 = vrot.slane %v80, 1
      %v82 = vadd.f32 %v80, %v81
      %83 = vst [vmem:[#allocation9] sm:$0x1] %v82
      %v84 = vld [vmem:[#allocation3] sm:$0xff]
      %v85 = vrot.slane %v84, 4
      %v86 = vadd.f32 %v84, %v85
      %v87 = vrot.slane %v86, 2
      %v88 = vadd.f32 %v86, %v87
      %v89 = vrot.slane %v88, 1
      %v90 = vadd.f32 %v88, %v89
      %91 = vst [vmem:[#allocation10] sm:$0x1] %v90
    $region25: #{tpu_custom_call.1} parent=1 // pred_fallthru
      _
    // Predicated region
    $region26: #{tpu_custom_call.1} parent=1 // pred_check
      _
    $region27: #{tpu_custom_call.1} parent=1 // pred_check_branch
      %93 = sbr.rel (0) target = $region29
    $region28: #{tpu_custom_call.1} parent=1 // pred_region
      %s95 = ssub.s32 16, 16
      %96 = vsyncadd [#allocation6], %s95
      %s98 = sshll.u32 [#allocation9], 4
      %s99 = int_to_ptr.vmem [resolvable:$true] %s98
      %101 = dma.vmem_to_hbm [thread:$0]  %s99, 16, %s2, [#allocation6]
    $region29: #{tpu_custom_call.1} parent=1 // pred_fallthru
      _
    // Predicated region
    $region30: #{tpu_custom_call.1} parent=1 // pred_check
      _
    $region31: #{tpu_custom_call.1} parent=1 // pred_check_branch
      %103 = sbr.rel (0) target = $region33
    $region32: #{tpu_custom_call.1} parent=1 // pred_region
      %s105 = ssub.s32 16, 16
      %106 = vsyncadd [#allocation11], %s105
      %s108 = sshll.u32 [#allocation10], 4
      %s109 = int_to_ptr.vmem [resolvable:$true] %s108
      %111 = dma.vmem_to_hbm [thread:$0]  %s109, 16, %s3, [#allocation11]
    $region33: #{tpu_custom_call.1} parent=1 // pred_fallthru
      _
    // Predicated region
    $region34: #{tpu_custom_call.1} parent=1 // pred_check
      _
    $region35: #{tpu_custom_call.1} parent=1 // pred_check_branch
      %113 = sbr.rel (0) target = $region37
    $region36: #{tpu_custom_call.1} parent=1 // pred_region
      %114 = dma.done [#allocation6], 16
    $region37: #{tpu_custom_call.1} parent=1 // pred_fallthru
      _
    // Predicated region
    $region38: #{tpu_custom_call.1} parent=1 // pred_check
      _
    $region39: #{tpu_custom_call.1} parent=1 // pred_check_branch
      %116 = sbr.rel (0) target = $region41
    $region40: #{tpu_custom_call.1} parent=1 // pred_region
      %117 = dma.done [#allocation11], 16
    $region41: #{tpu_custom_call.1} parent=1 // pred_fallthru
      _
    %118 = vsyncpa [#allocation5], 1
    %119 = vsyncpa [#allocation8], 1
    %120 = vsyncpa [#allocation6], 1
    %121 = vsyncpa [#allocation11], 1

</llo_original>
